<compile_context>
chip_gen: v6e
topology: v6e:2x2x1
jax: 0.10.0
libtpu: 0.0.40
codegen_flags: <defaults>
</compile_context>

<pallas_src>
import functools

import numpy as np

import jax
import jax.numpy as jnp
from jax.experimental import pallas as pl
from jax.experimental.pallas import tpu as pltpu


def _round_up(v, m):
    return (v + m - 1) // m * m


def _as_int(v):
    if isinstance(v, (tuple, list)):
        assert len(v) == 1
        return int(v[0])
    return int(v)


def _pool_out_size(l_in, kernel_size, stride, padding, dilation, ceil_mode):
    eff_k = dilation * (kernel_size - 1) + 1
    num = l_in + 2 * padding - eff_k
    if ceil_mode:
        l_out = -(-num // stride) + 1
        # PyTorch: the last window must start inside the input or left padding.
        if (l_out - 1) * stride >= l_in + padding:
            l_out -= 1
    else:
        l_out = num // stride + 1
    assert l_out >= 1, "invalid pooling configuration"
    return l_out


def _choose_groups(rows, l_out):
    """Fold G consecutive rows into the lane axis when l_out is lane-sparse."""
    if l_out >= 128 or rows <= 8:
        return 1
    target = -(-128 // l_out)                      # ceil(128 / l_out)
    divs = [g for g in range(1, min(rows, 256) + 1)
            if rows % g == 0 and rows // g >= 8]
    if not divs:
        return 1
    ge = [g for g in divs if target <= g <= 4 * target]
    if ge:
        return min(ge)                              # lane-dense with least folding
    le = [g for g in divs if g < target]
    return max(le) if le else 1


def _vmem_capacity_bytes():
    try:
        cap = getattr(pltpu.get_tpu_info(), "vmem_capacity_bytes", None)
        if cap:
            return int(cap)
    except Exception:
        pass
    return 128 * 1024 * 1024                        # v5e/v6e default


def _tensorcores_per_chip(vmem_cap):
    # v7x: 2 TensorCores / chip, 64 MiB VMEM per core.  v5e/v6e: 1 TC, 128 MiB.
    try:
        if "v7" in jax.devices()[0].device_kind.lower():
            return 2
    except Exception:
        pass
    return 2 if vmem_cap <= 64 * 1024 * 1024 else 1


def _maxpool1d_kernel_strided(x_ref, o_ref, xt_ref, *, kernel_size, stride,
                              dilation, padding, l_in, l_out, l_total, groups,
                              neg):
    # x_ref : (row_tile, groups*l_in)    natural layout (rows x lanes)
    # o_ref : (row_tile, groups*l_out)
    # xt_ref: (groups*l_total, row_tile) transposed + padded staging scratch.
    row_tile = x_ref.shape[0]
    right_pad = l_total - (padding + l_in)

    # Pad rows are rewritten every step: with a "parallel" grid split across
    # TensorCores, a program_id==0-only init would miss the second core's
    # scratch.  This is a few tiny vreg stores per step - negligible.
    for g in range(groups):
        base = g * l_total
        if padding > 0:
            xt_ref[base:base + padding, :] = jnp.full(
                (padding, row_tile), neg, dtype=xt_ref.dtype)
        if right_pad > 0:
            xt_ref[base + padding + l_in:base + l_total, :] = jnp.full(
                (right_pad, row_tile), neg, dtype=xt_ref.dtype)

    # Stage each folded segment transposed (XLU is otherwise idle here).
    for g in range(groups):
        base = g * l_total
        xt_ref[base + padding:base + padding + l_in, :] = jnp.transpose(
            x_ref[:, g * l_in:(g + 1) * l_in])

    # Window taps: sublane-strided loads; accumulator starts from tap 0.
    for g in range(groups):
        base = g * l_total
        acc = xt_ref[pl.ds(base, l_out, stride=stride), :]
        for t in range(1, kernel_size):
            acc = jnp.maximum(
                acc, xt_ref[pl.ds(base + t * dilation, l_out, stride=stride), :])
        # Back to natural layout; the full (row_tile, groups*l_out) output
        # block is lane-dense for the HBM writeback.
        o_ref[:, g * l_out:(g + 1) * l_out] = jnp.transpose(acc).astype(
            o_ref.dtype)


def _maxpool1d_kernel_unit_stride(x_ref, o_ref, *scratch, kernel_size, dilation,
                                  padding, l_in, l_out, l_total, groups, neg):
    # stride == 1 fast path: no transposes, taps are static lane-shifted slices.
    # x_ref : (row_tile, groups*l_in)
    # o_ref : (row_tile, groups*l_out)
    # scratch (optional): (row_tile, groups*l_total) padded staging buffer.
    row_tile = x_ref.shape[0]
    right_pad = l_total - (padding + l_in)
    needs_pad = padding > 0 or right_pad > 0

    if needs_pad:
        xp_ref = scratch[0]
        for g in range(groups):
            base = g * l_total
            if padding > 0:
                xp_ref[:, base:base + padding] = jnp.full(
                    (row_tile, padding), neg, dtype=xp_ref.dtype)
            if right_pad > 0:
                xp_ref[:, base + padding + l_in:base + l_total] = jnp.full(
                    (row_tile, right_pad), neg, dtype=xp_ref.dtype)
        for g in range(groups):
            base = g * l_total
            xp_ref[:, base + padding:base + padding + l_in] = (
                x_ref[:, g * l_in:(g + 1) * l_in])
        src, seg = xp_ref, l_total
    else:
        src, seg = x_ref, l_in                      # tap directly off the input block

    for g in range(groups):
        base = g * seg
        acc = src[:, base:base + l_out]
        for t in range(1, kernel_size):
            off = base + t * dilation
            acc = jnp.maximum(acc, src[:, off:off + l_out])
        o_ref[:, g * l_out:(g + 1) * l_out] = acc.astype(o_ref.dtype)


def max_pool1d(x, kernel_size, stride=None, padding=0, dilation=1,
               ceil_mode=False):
    """Pallas TPU implementation of torch.max_pool1d on an NCL tensor."""
    kernel_size = _as_int(kernel_size)
    stride = kernel_size if stride is None else _as_int(stride)
    padding = _as_int(padding)
    dilation = _as_int(dilation)

    n, c, l_in = x.shape
    l_out = _pool_out_size(l_in, kernel_size, stride, padding, dilation,
                           ceil_mode)

    rows = n * c
    # Fold G consecutive rows into the lane axis (free row-major reshape) so
    # short sequences still present lane-dense blocks and stores.
    groups = _choose_groups(rows, l_out)
    rows_g = rows // groups
    x2 = x.reshape(rows_g, groups * l_in)

    # Staging length per row: left padding + signal, extended so every tap
    # (including ceil_mode right-overhang) stays in bounds.
    need_len = (l_out - 1) * stride + (kernel_size - 1) * dilation + 1
    l_total = max(padding + l_in, need_len)

    if jnp.issubdtype(x.dtype, jnp.floating):
        neg = float("-inf")
    else:                                            # integer dtypes: dtype min
        neg = int(jnp.iinfo(x.dtype).min)

    unit_stride = (stride == 1)
    needs_scratch = (not unit_stride) or (l_total > l_in) or (padding > 0)

    # --- generation-aware tile sizing -------------------------------------
    vmem_cap = _vmem_capacity_bytes()
    num_tc = _tensorcores_per_chip(vmem_cap)
    budget = min(vmem_cap // 2, 64 * 1024 * 1024)   # ~64 MiB v5e/v6e, ~32 MiB v7x

    itemsize = jnp.dtype(x.dtype).itemsize
    scratch_cols = groups * l_total if needs_scratch else 0
    # Double-buffered in/out blocks + staging scratch, per group-row.
    per_row_bytes = (2 * groups * l_in + 2 * groups * l_out
                     + scratch_cols) * itemsize
    in_row_bytes = groups * l_in * itemsize
    target_block_bytes = 4 * 1024 * 1024            # HBM roofline wants >=2 MiB

    if rows_g <= 8:
        row_tile = rows_g                            # single block, full row dim
    else:
        row_tile = min(max(8, target_block_bytes // in_row_bytes),
                       max(8, budget // per_row_bytes),
                       _round_up(rows_g, 8))
        row_tile = max(8, row_tile // 8 * 8)
        if row_tile >= 128:
            row_tile -= row_tile % 128               # lane-dense transposed scratch
        # Megacore: give both v7x TensorCores row-axis work; no forced split
        # on single-core v5e/v6e.
        min_progs = 4 if num_tc >= 2 else 1
        if min_progs > 1 and rows_g >= min_progs * 8:
            while row_tile > 8 and pl.cdiv(rows_g, row_tile) < min_progs:
                row_tile = max(8, (row_tile // 2) // 8 * 8)
    grid = (pl.cdiv(rows_g, row_tile),)
    # TODO(synk): for very long L with tiny N*C, also tile the length axis with
    # a (kernel_size-1)*dilation halo so VMEM use does not scale with L
    # (matters first on v7x's 64 MiB VMEM).

    need_bytes = per_row_bytes * row_tile
    vmem_limit_bytes = int(min(vmem_cap * 3 // 4,
                               max(need_bytes + (8 << 20), 16 << 20)))

    if unit_stride:
        kernel = functools.partial(
            _maxpool1d_kernel_unit_stride,
            kernel_size=kernel_size, dilation=dilation, padding=padding,
            l_in=l_in, l_out=l_out, l_total=l_total, groups=groups, neg=neg)
        scratch_shapes = ([pltpu.VMEM((row_tile, groups * l_total), x.dtype)]
                          if needs_scratch else [])
    else:
        kernel = functools.partial(
            _maxpool1d_kernel_strided,
            kernel_size=kernel_size, stride=stride, dilation=dilation,
            padding=padding, l_in=l_in, l_out=l_out, l_total=l_total,
            groups=groups, neg=neg)
        scratch_shapes = [pltpu.VMEM((groups * l_total, row_tile), x.dtype)]

    out2 = pl.pallas_call(
        kernel,
        out_shape=jax.ShapeDtypeStruct((rows_g, groups * l_out), x.dtype),
        grid_spec=pltpu.PrefetchScalarGridSpec(
            num_scalar_prefetch=0,
            grid=grid,
            in_specs=[pl.BlockSpec((row_tile, groups * l_in), lambda i: (i, 0))],
            out_specs=pl.BlockSpec((row_tile, groups * l_out),
                                   lambda i: (i, 0)),
            scratch_shapes=scratch_shapes,
        ),
        compiler_params=pltpu.CompilerParams(
            dimension_semantics=("parallel",),
            vmem_limit_bytes=vmem_limit_bytes,
        ),
    )(x2)

    return out2.reshape(n, c, l_out)


class MaxPool1d:
    """Mirror of torch.nn.MaxPool1d (forward only), backed by the Pallas kernel."""

    def __init__(self, kernel_size, stride=None, padding=0, dilation=1,
                 ceil_mode=False):
        self.kernel_size = kernel_size
        self.stride = stride if stride is not None else kernel_size
        self.padding = padding
        self.dilation = dilation
        self.ceil_mode = ceil_mode

    def __call__(self, x):
        self.out = max_pool1d(x, self.kernel_size, self.stride, self.padding,
                              self.dilation, self.ceil_mode)
        return self.out


def _reference_max_pool1d(x, kernel_size, stride, padding, dilation, ceil_mode):
    # Pure numpy reference mirroring torch.max_pool1d semantics.
    xn = np.asarray(x)
    n, c, l_in = xn.shape
    l_out = _pool_out_size(l_in, kernel_size, stride, padding, dilation,
                           ceil_mode)
    out = np.full((n, c, l_out), -np.inf, dtype=np.float64)
    for j in range(l_out):
        for t in range(kernel_size):
            p = j * stride + t * dilation - padding
            if 0 <= p < l_in:
                out[:, :, j] = np.maximum(out[:, :, j],
                                          xn[:, :, p].astype(np.float64))
    return jnp.asarray(out.astype(xn.dtype))


def _check(x, cfg):
    pool = MaxPool1d(**cfg)
    y = jax.block_until_ready(pool(x))
    y_ref = _reference_max_pool1d(x, pool.kernel_size, pool.stride,
                                  pool.padding, pool.dilation, pool.ceil_mode)
    assert y.shape == y_ref.shape, (cfg, y.shape, y_ref.shape)
    assert jnp.allclose(y, y_ref), f"Pallas MaxPool1d mismatch for {cfg}"


if __name__ == "__main__":
    key = jax.random.PRNGKey(0)
    k1, k2 = jax.random.split(key)
    x_a = jax.random.normal(k1, (2, 4, 16), dtype=jnp.float32)    # NCL
    x_b = jax.random.normal(k2, (4, 16, 16), dtype=jnp.float32)   # NCL, row-folding

    cases = [
        (x_a, dict(kernel_size=3, stride=2, padding=1)),                # strided path
        (x_a, dict(kernel_size=2, stride=3, padding=1, dilation=2,
                   ceil_mode=True)),                                    # ceil + dilation
        (x_a, dict(kernel_size=3, stride=1, padding=1)),                # stride==1 fast path (padded)
        (x_b, dict(kernel_size=3, stride=2, padding=1)),                # folded lanes (G>1), strided
        (x_b, dict(kernel_size=2)),                                     # no-pad strided, folded
        (x_b, dict(kernel_size=4, stride=1)),                           # stride==1, no scratch, folded
    ]
    for x_in, cfg in cases:
        _check(x_in, cfg)

    print("KERNEL_OK")
</pallas_src>

<mosaic_0001>
module attributes {stable_mosaic.version = 11 : i64} {
  func.func @_maxpool1d_kernel_strided(%arg0: i32, %arg1: memref<8x16xf32, #tpu.memory_space<vmem>>, %arg2: memref<8x8xf32, #tpu.memory_space<vmem>>, %arg3: memref<17x8xf32, #tpu.memory_space<vmem>>) attributes {dimension_semantics = [#tpu.dimension_semantics<parallel>], iteration_bounds = array<i64: 1>, scalar_prefetch = 0 : i64, scratch_operands = 1 : i64, tpu.core_type = #tpu.core_type<tc>, window_params = [{transform_indices = @transform_0, window_bounds = array<i64: 8, 16>}, {transform_indices = @transform_1, window_bounds = array<i64: 8, 8>}]} {
    %cst = arith.constant 0xFF800000 : f32
    %0 = vector.broadcast %cst : f32 to vector<1x8xf32>
    %c0 = arith.constant 0 : index
    %c0_0 = arith.constant 0 : index
    %1 = vector.load %arg3[%c0, %c0_0] : memref<17x8xf32, #tpu.memory_space<vmem>>, vector<1x8xf32>
    tpu.vector_store %arg3[%c0, %c0_0], %0 {strides = array<i32>} : memref<17x8xf32, #tpu.memory_space<vmem>>, vector<1x8xf32>,
    %c0_1 = arith.constant 0 : index
    %c0_2 = arith.constant 0 : index
    %2 = vector.load %arg1[%c0_1, %c0_2] : memref<8x16xf32, #tpu.memory_space<vmem>>, vector<8x16xf32>
    %3 = tpu.transpose %2, [1, 0] : vector<8x16xf32> -> vector<16x8xf32>
    %c1 = arith.constant 1 : index
    %c0_3 = arith.constant 0 : index
    %4 = vector.load %arg3[%c1, %c0_3] : memref<17x8xf32, #tpu.memory_space<vmem>>, vector<16x8xf32>
    tpu.vector_store %arg3[%c1, %c0_3], %3 {strides = array<i32>} : memref<17x8xf32, #tpu.memory_space<vmem>>, vector<16x8xf32>,
    %c0_4 = arith.constant 0 : index
    %c0_5 = arith.constant 0 : index
    %5 = tpu.strided_load %arg3[%c0_4, %c0_5] {strides = array<i32: 2, 1>} : memref<17x8xf32, #tpu.memory_space<vmem>>, vector<8x8xf32>
    %c1_6 = arith.constant 1 : index
    %c0_7 = arith.constant 0 : index
    %6 = tpu.strided_load %arg3[%c1_6, %c0_7] {strides = array<i32: 2, 1>} : memref<17x8xf32, #tpu.memory_space<vmem>>, vector<8x8xf32>
    %7 = arith.maximumf %5, %6 : vector<8x8xf32>
    %c2 = arith.constant 2 : index
    %c0_8 = arith.constant 0 : index
    %8 = tpu.strided_load %arg3[%c2, %c0_8] {strides = array<i32: 2, 1>} : memref<17x8xf32, #tpu.memory_space<vmem>>, vector<8x8xf32>
    %9 = arith.maximumf %7, %8 : vector<8x8xf32>
    %10 = tpu.transpose %9, [1, 0] : vector<8x8xf32> -> vector<8x8xf32>
    %c0_9 = arith.constant 0 : index
    %c0_10 = arith.constant 0 : index
    %11 = vector.load %arg2[%c0_9, %c0_10] : memref<8x8xf32, #tpu.memory_space<vmem>>, vector<8x8xf32>
    tpu.vector_store %arg2[%c0_9, %c0_10], %10 {strides = array<i32>} : memref<8x8xf32, #tpu.memory_space<vmem>>, vector<8x8xf32>,
    return
  }
  func.func @transform_0(%arg0: i32) -> (i32, i32) {
    %c0_i32 = arith.constant 0 : i32
    %c0_i32_0 = arith.constant 0 : i32
    return %arg0, %c0_i32 : i32, i32
  }
  func.func @transform_1(%arg0: i32) -> (i32, i32) {
    %c0_i32 = arith.constant 0 : i32
    %c0_i32_0 = arith.constant 0 : i32
    return %arg0, %c0_i32 : i32, i32
  }
}

</mosaic_0001>

<llo_original>
// kernel: tpu_custom_call.1
$region0: #{tpu_custom_call.1}
  #allocation0 [shape = 'u32[]', space=smem, size = 0x4, offset = 0x4, fixed_abs, tag = 'smem constant byte address 0x4 - core index']
  #allocation1 [shape = 'u32[144,128]{1,0:T(1,128)}', space=vmem, size = 0x12000, scoped, tag = 'internal scratch']
  #allocation2 [shape = 'f32[17,8]{1,0:T(8,128)}', space=vmem, size = 0x3000, scoped, tag = 'scratch operand']
  %s0 = inlined_call_operand.hbm [shape: f32[8,16], index: 0, kind: input, shape index: {}]
  %s1 = inlined_call_operand.hbm [shape: f32[8,8], index: 1, kind: output, shape index: {}]
  %s2 = sld [smem:[#allocation0]]
  $region18: #{tpu_custom_call.1} parent=0
    _
  %s4 = ssub.s32 1, %s2
  %s5 = scalar_select 0, %s4, %s2
  $region1: #{tpu_custom_call.1} parent=0
    #allocation3 [shape = 'u8[4096]{0}', space=vmem, size = 0x1000, scoped, tag = 'input window, operand 0, single buffered']
    #allocation4 [shape = 's32[1]{0}', space=sflag, size = 0x4, scoped, tag = 'scoped memory for tpu_custom_call.1']
    #allocation5 [shape = 's32[1]{0}', space=sflag, size = 0x4, scoped, tag = 'scoped memory for tpu_custom_call.1']
    #allocation6 [shape = 'u8[4096]{0}', space=vmem, size = 0x1000, scoped, tag = 'output window, operand 0, single buffered']
    %6 = vsyncpa [#allocation4], 0
    %7 = vsyncpa [#allocation5], 0
    // Predicated region
    $region2: #{tpu_custom_call.1} parent=1 // pred_check
      _
    $region3: #{tpu_custom_call.1} parent=1 // pred_check_branch
      %9 = sbr.rel (0) target = $region5
    $region4: #{tpu_custom_call.1} parent=1 // pred_region
      %s11 = ssub.s32 128, 128
      %12 = vsyncadd [#allocation4], %s11
      %s14 = sshll.u32 [#allocation3], 4
      %s15 = int_to_ptr.vmem [resolvable:$true] %s14
      %17 = dma.hbm_to_vmem [thread:$0]  %s0, 128, %s15, [#allocation4]
    $region5: #{tpu_custom_call.1} parent=1 // pred_fallthru
      _
    // Predicated region
    $region6: #{tpu_custom_call.1} parent=1 // pred_check
      _
    $region7: #{tpu_custom_call.1} parent=1 // pred_check_branch
      %19 = sbr.rel (0) target = $region9
    $region8: #{tpu_custom_call.1} parent=1 // pred_region
      %20 = dma.done [#allocation4], 128
    $region9: #{tpu_custom_call.1} parent=1 // pred_fallthru
      _
    %vm21 = vcmask 57344
    %22 = vst.msk [vmem:[#allocation2] sm:$0x1] %vm21, -inf
    %v23 = vld [vmem:[#allocation3] sm:$0xff]
    %24 = vxpose.xlu0.b32.start [1/16] %v23, 128
    %25 = vxpose.xlu0.b32.cont [2/16] 0.0, 128
    %26 = vxpose.xlu0.b32.cont [3/16] 0.0, 128
    %27 = vxpose.xlu0.b32.cont [4/16] 0.0, 128
    %28 = vxpose.xlu0.b32.cont [5/16] 0.0, 128
    %29 = vxpose.xlu0.b32.cont [6/16] 0.0, 128
    %30 = vxpose.xlu0.b32.cont [7/16] 0.0, 128
    %31 = vxpose.xlu0.b32.cont [8/16] 0.0, 128
    %32 = vxpose.xlu0.b32.cont [9/16] 0.0, 128
    %33 = vxpose.xlu0.b32.cont [10/16] 0.0, 128
    %34 = vxpose.xlu0.b32.cont [11/16] 0.0, 128
    %35 = vxpose.xlu0.b32.cont [12/16] 0.0, 128
    %36 = vxpose.xlu0.b32.cont [13/16] 0.0, 128
    %37 = vxpose.xlu0.b32.cont [14/16] 0.0, 128
    %38 = vxpose.xlu0.b32.cont [15/16] 0.0, 128
    %39 = vxpose.xlu0.b32.end [16/16] 0.0, 128
    %v40 = vpop.trf.xlu0
    %v41 = vpop.trf.xlu0
    %v42 = vpop.trf.xlu0
    %v43 = vpop.trf.xlu0
    %v44 = vpop.trf.xlu0
    %v45 = vpop.trf.xlu0
    %v46 = vpop.trf.xlu0
    %v47 = vpop.trf.xlu0
    %v48 = vpop.trf.xlu0
    %v49 = vpop.trf.xlu0
    %v50 = vpop.trf.xlu0
    %v51 = vpop.trf.xlu0
    %v52 = vpop.trf.xlu0
    %v53 = vpop.trf.xlu0
    %v54 = vpop.trf.xlu0
    %v55 = vpop.trf.xlu0
    %vm56 = vcmask 64512
    %57 = vst.msk [vmem:[#allocation2 + $0x1] sm:$0xff] %vm56, %v40
    %58 = vst.msk [vmem:[#allocation2 + $0x9] sm:$0xff] %vm56, %v41
    %v59 = vld [vmem:[#allocation2] ss:$2 sm:$0xff]
    %s60 = scalar_lea.vmem [#allocation2], 1
    %v61 = vld [vmem:[%s60] ss:$2 sm:$0xff]
    %v62 = vmax.f32 %v59, %v61
    %s63 = scalar_lea.vmem [#allocation2], 2
    %v64 = vld [vmem:[%s63] ss:$2 sm:$0xff]
    %v65 = vmax.f32 %v62, %v64
    %66 = vxpose.xlu0.b32.start [1/16] %v65, 128
    %67 = vxpose.xlu0.b32.cont [2/16] 0.0, 128
    %68 = vxpose.xlu0.b32.cont [3/16] 0.0, 128
    %69 = vxpose.xlu0.b32.cont [4/16] 0.0, 128
    %70 = vxpose.xlu0.b32.cont [5/16] 0.0, 128
    %71 = vxpose.xlu0.b32.cont [6/16] 0.0, 128
    %72 = vxpose.xlu0.b32.cont [7/16] 0.0, 128
    %73 = vxpose.xlu0.b32.cont [8/16] 0.0, 128
    %74 = vxpose.xlu0.b32.cont [9/16] 0.0, 128
    %75 = vxpose.xlu0.b32.cont [10/16] 0.0, 128
    %76 = vxpose.xlu0.b32.cont [11/16] 0.0, 128
    %77 = vxpose.xlu0.b32.cont [12/16] 0.0, 128
    %78 = vxpose.xlu0.b32.cont [13/16] 0.0, 128
    %79 = vxpose.xlu0.b32.cont [14/16] 0.0, 128
    %80 = vxpose.xlu0.b32.cont [15/16] 0.0, 128
    %81 = vxpose.xlu0.b32.end [16/16] 0.0, 128
    %v82 = vpop.trf.xlu0
    %v83 = vpop.trf.xlu0
    %v84 = vpop.trf.xlu0
    %v85 = vpop.trf.xlu0
    %v86 = vpop.trf.xlu0
    %v87 = vpop.trf.xlu0
    %v88 = vpop.trf.xlu0
    %v89 = vpop.trf.xlu0
    %v90 = vpop.trf.xlu0
    %v91 = vpop.trf.xlu0
    %v92 = vpop.trf.xlu0
    %v93 = vpop.trf.xlu0
    %v94 = vpop.trf.xlu0
    %v95 = vpop.trf.xlu0
    %v96 = vpop.trf.xlu0
    %v97 = vpop.trf.xlu0
    %98 = vst.msk [vmem:[#allocation6] sm:$0xff] %vm56, %v82
    // Predicated region
    $region10: #{tpu_custom_call.1} parent=1 // pred_check
      _
    $region11: #{tpu_custom_call.1} parent=1 // pred_check_branch
      %100 = sbr.rel (0) target = $region13
    $region12: #{tpu_custom_call.1} parent=1 // pred_region
      %s102 = ssub.s32 128, 128
      %103 = vsyncadd [#allocation5], %s102
      %s105 = sshll.u32 [#allocation6], 4
      %s106 = int_to_ptr.vmem [resolvable:$true] %s105
      %108 = dma.vmem_to_hbm [thread:$0]  %s106, 128, %s1, [#allocation5]
    $region13: #{tpu_custom_call.1} parent=1 // pred_fallthru
      _
    // Predicated region
    $region14: #{tpu_custom_call.1} parent=1 // pred_check
      _
    $region15: #{tpu_custom_call.1} parent=1 // pred_check_branch
      %110 = sbr.rel (0) target = $region17
    $region16: #{tpu_custom_call.1} parent=1 // pred_region
      %111 = dma.done [#allocation5], 128
    $region17: #{tpu_custom_call.1} parent=1 // pred_fallthru
      _
    %112 = vsyncpa [#allocation4], 1
    %113 = vsyncpa [#allocation5], 1

</llo_original>
